<compile_context>
chip_gen: v6e
topology: v6e:2x2x1
jax: 0.10.0
libtpu: 0.0.40
codegen_flags: <defaults>
</compile_context>

<pallas_src>
import functools
import math

import jax
import jax.numpy as jnp
from jax.experimental import pallas as pl
from jax.experimental.pallas import tpu as pltpu


def _ep_gru_policy_kernel(gi_ref, g_ref, mask_ref, h0_ref,
                          whh_ref, bh_ref, whead_ref, bhead_ref,
                          misc_ref, h_ref,
                          *, H, A_pad, SC, Tb, T_real):
    """Tb recurrent steps per grid iteration; weights & hidden carry resident."""
    blk = pl.program_id(0)

    # hidden-state carry lives in the resident output block; init at block 0
    @pl.when(blk == 0)
    def _():
        h_ref[...] = h0_ref[...]

    h = h_ref[...]                          # [Bp, 2H] f32  (actor | critic)
    whh = whh_ref[...]                      # [2H, 6H] block-diag recurrent weight
    bh = bh_ref[...]                        # [1, 6H]
    whead = whead_ref[...]                  # [2H, A_pad + SC] fused policy+value
    bhead = bhead_ref[...]                  # [1, A_pad + SC]
    mask = mask_ref[...] > 0                # [Bp, A_pad]
    neg = jnp.finfo(jnp.float32).min        # torch.finfo(dtype).min

    Bp = h.shape[0]
    H2, H4 = 2 * H, 4 * H
    ids = jax.lax.broadcasted_iota(jnp.int32, (Bp, A_pad), 1)
    ids_sc = jax.lax.broadcasted_iota(jnp.int32, (Bp, SC), 1)
    guard_tail = (T_real % Tb) != 0         # only the last block can be partial

    for tb in range(Tb):                    # statically unrolled inner time loop
        gi = gi_ref[tb]                     # [Bp, 6H] precomputed x @ Wi + bi
        g = g_ref[tb]                       # [Bp, A_pad] gumbel noise

        # one fused recurrent matmul for actor+critic (block-diag, K = 2H)
        gh = jnp.dot(h, whh, preferred_element_type=jnp.float32) + bh
        # gate layout along lanes: [r_a | r_c | z_a | z_c | n_a | n_c]
        rz = jax.nn.sigmoid(gi[:, :H4] + gh[:, :H4])
        r = rz[:, :H2]
        z = rz[:, H2:]
        # EpGRUCell: episodic memory m_t added to candidate pre-activation;
        # m_t == 0 on the cue=None path.
        n = jnp.tanh(gi[:, H4:] + r * gh[:, H4:])
        h_new = (1.0 - z) * n + z * h       # [Bp, 2H], no concat needed

        if guard_tail:
            h = jnp.where(blk * Tb + tb < T_real, h_new, h)
        else:
            h = h_new

        # fused policy + value heads: one matmul, lane-dense result
        head = jnp.dot(h, whead, preferred_element_type=jnp.float32) + bhead
        logits = jnp.where(mask, head[:, :A_pad], neg)      # masked logits
        val = head[:, A_pad:A_pad + 1]                      # value from h_critic

        lmax = jnp.max(logits, axis=1, keepdims=True)
        unnorm = jnp.exp(logits - lmax)
        denom = jnp.sum(unnorm, axis=1, keepdims=True)
        logp = logits - (lmax + jnp.log(denom))             # normalized logits
        probs = unnorm / denom

        # Gumbel-max sampling (noise drawn host-side, fresh per step)
        scores = jnp.where(mask, logp + g, neg)
        smax = jnp.max(scores, axis=1, keepdims=True)
        action = jnp.min(jnp.where(scores == smax, ids, A_pad), axis=1,
                         keepdims=True)
        onehot = ids == action
        logp_a = jnp.sum(jnp.where(onehot, logp, 0.0), axis=1, keepdims=True)
        # CategoricalMasked entropy: masked terms contribute 0
        ent = -jnp.sum(jnp.where(mask, logp * probs, 0.0), axis=1, keepdims=True)

        # TODO(synk): action is round-tripped through f32 (exact for ids < 2^24).
        scalars = (jnp.where(ids_sc == 0, action.astype(jnp.float32), 0.0)
                   + jnp.where(ids_sc == 1, logp_a, 0.0)
                   + jnp.where(ids_sc == 2, ent, 0.0)
                   + jnp.where(ids_sc == 3, val, 0.0))
        # two aligned lane-dense stores (no lane-axis concatenate)
        misc_ref[tb, :, :A_pad] = probs
        misc_ref[tb, :, A_pad:] = scalars

    h_ref[...] = h


def prepare_params(params):
    """Fuse / reorder / pad the torch-layout params once (amortized over calls)."""
    F, H3 = params["wa_i"].shape
    H = H3 // 3
    A = params["w_pi"].shape[1]
    A_pad = max(128, ((A + 127) // 128) * 128)
    SC = 128                                  # width of the packed-scalar slab

    def interleave_cols(wa, wc):
        # [*, 3H] actor + [*, 3H] critic -> [*, 6H] laid out (r_a r_c z_a z_c n_a n_c)
        parts = []
        for g in range(3):
            parts.append(wa[..., g * H:(g + 1) * H])
            parts.append(wc[..., g * H:(g + 1) * H])
        return jnp.concatenate(parts, axis=-1)

    wi = interleave_cols(params["wa_i"], params["wc_i"])          # [F, 6H]
    bi = interleave_cols(params["ba_i"], params["bc_i"])          # [1, 6H]
    bh = interleave_cols(params["ba_h"], params["bc_h"])          # [1, 6H]

    # block-diagonal recurrent weight: rows [h_actor | h_critic]
    zeros = jnp.zeros((H, 3 * H), jnp.float32)
    wa_h_bd = jnp.concatenate([params["wa_h"], zeros], axis=0)    # [2H, 3H]
    wc_h_bd = jnp.concatenate([zeros, params["wc_h"]], axis=0)    # [2H, 3H]
    whh = interleave_cols(wa_h_bd, wc_h_bd)                       # [2H, 6H]

    # fused policy + value head: logits in lanes [0, A), value in lane A_pad
    whead = jnp.zeros((2 * H, A_pad + SC), jnp.float32)
    whead = whead.at[:H, :A].set(params["w_pi"])                  # policy <- h_actor
    whead = whead.at[H:, A_pad].set(params["w_v"][0])             # value  <- h_critic
    bhead = jnp.zeros((1, A_pad + SC), jnp.float32)
    bhead = bhead.at[:, :A].set(params["b_pi"])
    bhead = bhead.at[:, A_pad].set(params["b_v"][0, 0])

    return dict(wi=wi, bi=bi, whh=whh, bh=bh, whead=whead, bhead=bhead,
                F=F, H=H, A=A, A_pad=A_pad, SC=SC)


def ep_gru_policy_rollout(kp, obs_seq, states_gru=None, mask=None, cue=None,
                          rng=None, time_block=8):
    """Run T forward() steps (cue=None path) inside one pallas_call."""
    T, B = obs_seq.shape[:2]
    F, H, A, A_pad, SC = kp["F"], kp["H"], kp["A"], kp["A_pad"], kp["SC"]
    Bp = max(8, ((B + 7) // 8) * 8)
    Tb = max(1, min(time_block, T))
    Tp = ((T + Tb - 1) // Tb) * Tb
    MISC = A_pad + SC

    feats = obs_seq.reshape(T, B, -1).astype(jnp.float32)     # FlattenExtractor
    assert feats.shape[-1] == F
    feats = jnp.zeros((T, Bp, F), jnp.float32).at[:, :B].set(feats)

    # Hoisted input projection: one matmul at M = T*Bp (no recurrent dependence),
    # so only the small [Bp, 6H] gi stream enters the serial time loop.
    gi = jnp.dot(feats.reshape(T * Bp, F), kp["wi"]) + kp["bi"]
    gi_all = jnp.zeros((Tp, Bp, 6 * H), jnp.float32).at[:T].set(
        gi.reshape(T, Bp, 6 * H))

    if states_gru is None:
        h0 = jnp.zeros((Bp, 2 * H), jnp.float32)
    else:
        h_a, h_c = states_gru
        h0 = (jnp.zeros((Bp, 2 * H), jnp.float32)
              .at[:B, :H].set(h_a).at[:B, H:].set(h_c))

    if mask is None:
        m = jnp.ones((B, A), jnp.int32)
    else:
        m = mask.astype(jnp.int32)
    mask_full = jnp.zeros((Bp, A_pad), jnp.int32)
    mask_full = mask_full.at[:B, :A].set(m)
    mask_full = mask_full.at[B:, :A].set(1)        # padded batch rows: all valid

    if rng is None:
        rng = jax.random.PRNGKey(0)
    gumbel = jax.random.gumbel(rng, (Tp, Bp, A_pad), jnp.float32)

    # TODO(synk): cue != None (DND get_memory / save_memory) not supported.

    blk3 = lambda b: (b, 0, 0)
    const2 = lambda b: (0, 0)
    in_specs = [
        pl.BlockSpec((Tb, Bp, 6 * H), blk3),          # gi (per-step stream)
        pl.BlockSpec((Tb, Bp, A_pad), blk3),          # gumbel noise
        pl.BlockSpec((Bp, A_pad), const2),            # action mask (resident)
        pl.BlockSpec((Bp, 2 * H), const2),            # h0 (resident)
        pl.BlockSpec((2 * H, 6 * H), const2),         # whh (resident)
        pl.BlockSpec((1, 6 * H), const2),             # bh
        pl.BlockSpec((2 * H, A_pad + SC), const2),    # whead
        pl.BlockSpec((1, A_pad + SC), const2),        # bhead
    ]
    out_shapes = (
        jax.ShapeDtypeStruct((Tp, Bp, MISC), jnp.float32),   # packed per-step outs
        jax.ShapeDtypeStruct((Bp, 2 * H), jnp.float32),      # final [h_a | h_c]
    )
    out_specs = (
        pl.BlockSpec((Tb, Bp, MISC), blk3),
        pl.BlockSpec((Bp, 2 * H), const2),
    )

    kernel = functools.partial(_ep_gru_policy_kernel,
                               H=H, A_pad=A_pad, SC=SC, Tb=Tb, T_real=T)
    misc, h_out = pl.pallas_call(
        kernel,
        out_shape=out_shapes,
        grid=(Tp // Tb,),
        in_specs=in_specs,
        out_specs=out_specs,
        compiler_params=pltpu.CompilerParams(
            dimension_semantics=("arbitrary",),
            vmem_limit_bytes=32 * 1024 * 1024),
    )(gi_all, gumbel, mask_full, h0,
      kp["whh"], kp["bh"], kp["whead"], kp["bhead"])

    policy = misc[:T, :B, :A]                               # probs over real actions
    action = misc[:T, :B, A_pad].astype(jnp.int32)
    log_prob = misc[:T, :B, A_pad + 1]
    entropy = misc[:T, :B, A_pad + 2]
    value = misc[:T, :B, A_pad + 3:A_pad + 4]
    new_states = [h_out[:B, :H], h_out[:B, H:]]
    return action, policy, log_prob, entropy, value, new_states


def ep_gru_policy_forward(kp, obs, states_gru=None, mask=None, cue=None, rng=None):
    """Single-step forward, matching EpGRURecurrentActorCriticPolicy.forward."""
    action, policy, log_prob, entropy, value, new_states = ep_gru_policy_rollout(
        kp, obs[None], states_gru=states_gru, mask=mask, cue=cue, rng=rng)
    # torch shapes: action/log_prob/entropy [B], policy [B, A], value [B, 1]
    return action[0], policy[0], log_prob[0], entropy[0], value[0], new_states


def init_params(key, feature_dim, action_dim, hidden_dim):
    ks = jax.random.split(key, 12)
    gb = 1.0 / math.sqrt(hidden_dim)     # torch GRUCell / Linear uniform bound

    def u(k, shape, bound):
        return jax.random.uniform(k, shape, jnp.float32, -bound, bound)

    # torch.nn.GRUCell stores weight_ih as [3H, F]; we keep the transpose [F, 3H]
    return dict(
        wa_i=u(ks[0], (feature_dim, 3 * hidden_dim), gb),
        wa_h=u(ks[1], (hidden_dim, 3 * hidden_dim), gb),
        ba_i=u(ks[2], (1, 3 * hidden_dim), gb),
        ba_h=u(ks[3], (1, 3 * hidden_dim), gb),
        wc_i=u(ks[4], (feature_dim, 3 * hidden_dim), gb),
        wc_h=u(ks[5], (hidden_dim, 3 * hidden_dim), gb),
        bc_i=u(ks[6], (1, 3 * hidden_dim), gb),
        bc_h=u(ks[7], (1, 3 * hidden_dim), gb),
        w_pi=u(ks[8], (hidden_dim, action_dim), gb),
        b_pi=u(ks[9], (1, action_dim), gb),
        w_v=u(ks[10], (1, hidden_dim), gb),      # ValueNet weight [1, H]
        b_v=u(ks[11], (1, 1), gb),
    )


if __name__ == "__main__":
    key = jax.random.PRNGKey(0)
    k_obs, k_par, k_s1, k_s2, k_seq = jax.random.split(key, 5)

    B, C, Hs, Ws = 2, 4, 16, 16
    feature_dim = C * Hs * Ws            # FlattenExtractor output dim = 1024
    action_dim = 8
    gru_hidden_dim = 128                 # module default

    raw_params = init_params(k_par, feature_dim, action_dim, gru_hidden_dim)
    kp = prepare_params(raw_params)

    obs = jax.random.normal(k_obs, (B, C, Hs, Ws), jnp.float32)   # NCHW
    # Mask out action 0 for batch element 1 to exercise CategoricalMasked.
    mask = jnp.ones((B, action_dim), jnp.int32).at[1, 0].set(0)

    # single module forward (T = 1)
    action, policy, log_prob, entropy, value, states = ep_gru_policy_forward(
        kp, obs, states_gru=None, mask=mask, cue=None, rng=k_s1)

    # T forward steps fused into one pallas_call; time_block=4 exercises both
    # multi-block pipelining and the partial-tail guard (T=6 -> blocks of 4).
    T = 6
    obs_seq = jax.random.normal(k_seq, (T, B, C, Hs, Ws), jnp.float32)
    rollout_out = ep_gru_policy_rollout(
        kp, obs_seq, states_gru=states, mask=mask, cue=None, rng=k_s2,
        time_block=4)

    jax.block_until_ready((action, policy, log_prob, entropy, value, states,
                           rollout_out))
    print("KERNEL_OK")
</pallas_src>

<mosaic_0001>
module attributes {stable_mosaic.version = 11 : i64} {
  func.func @_ep_gru_policy_kernel(%arg0: i32, %arg1: memref<1x8x768xf32, #tpu.memory_space<vmem>>, %arg2: memref<1x8x128xf32, #tpu.memory_space<vmem>>, %arg3: memref<8x128xi32, #tpu.memory_space<vmem>>, %arg4: memref<8x256xf32, #tpu.memory_space<vmem>>, %arg5: memref<256x768xf32, #tpu.memory_space<vmem>>, %arg6: memref<1x768xf32, #tpu.memory_space<vmem>>, %arg7: memref<256x256xf32, #tpu.memory_space<vmem>>, %arg8: memref<1x256xf32, #tpu.memory_space<vmem>>, %arg9: memref<1x8x256xf32, #tpu.memory_space<vmem>>, %arg10: memref<8x256xf32, #tpu.memory_space<vmem>>) attributes {dimension_semantics = [#tpu.dimension_semantics<arbitrary>], iteration_bounds = array<i64: 1>, scalar_prefetch = 0 : i64, scratch_operands = 0 : i64, tpu.core_type = #tpu.core_type<tc>, window_params = [{transform_indices = @transform_0, window_bounds = array<i64: 1, 8, 768>}, {transform_indices = @transform_1, window_bounds = array<i64: 1, 8, 128>}, {pipeline_mode = #tpu.pipeline_mode<synchronous>, transform_indices = @transform_2, window_bounds = array<i64: 8, 128>}, {pipeline_mode = #tpu.pipeline_mode<synchronous>, transform_indices = @transform_3, window_bounds = array<i64: 8, 256>}, {pipeline_mode = #tpu.pipeline_mode<synchronous>, transform_indices = @transform_4, window_bounds = array<i64: 256, 768>}, {pipeline_mode = #tpu.pipeline_mode<synchronous>, transform_indices = @transform_5, window_bounds = array<i64: 1, 768>}, {pipeline_mode = #tpu.pipeline_mode<synchronous>, transform_indices = @transform_6, window_bounds = array<i64: 256, 256>}, {pipeline_mode = #tpu.pipeline_mode<synchronous>, transform_indices = @transform_7, window_bounds = array<i64: 1, 256>}, {transform_indices = @transform_8, window_bounds = array<i64: 1, 8, 256>}, {pipeline_mode = #tpu.pipeline_mode<synchronous>, transform_indices = @transform_9, window_bounds = array<i64: 8, 256>}]} {
    %c0_i32 = arith.constant 0 : i32
    %0 = arith.cmpi eq, %arg0, %c0_i32 : i32
    %1 = arith.extui %0 : i1 to i32
    %c0_i32_0 = arith.constant 0 : i32
    %2 = arith.cmpi ne, %1, %c0_i32_0 : i32
    scf.if %2 {
      %c0_45 = arith.constant 0 : index
      %c0_46 = arith.constant 0 : index
      %119 = vector.load %arg4[%c0_45, %c0_46] : memref<8x256xf32, #tpu.memory_space<vmem>>, vector<8x256xf32>
      %c0_47 = arith.constant 0 : index
      %c0_48 = arith.constant 0 : index
      %120 = vector.load %arg10[%c0_47, %c0_48] : memref<8x256xf32, #tpu.memory_space<vmem>>, vector<8x256xf32>
      tpu.vector_store %arg10[%c0_47, %c0_48], %119 {strides = array<i32>} : memref<8x256xf32, #tpu.memory_space<vmem>>, vector<8x256xf32>,
    } else {
    }
    %c0 = arith.constant 0 : index
    %c0_1 = arith.constant 0 : index
    %3 = vector.load %arg10[%c0, %c0_1] : memref<8x256xf32, #tpu.memory_space<vmem>>, vector<8x256xf32>
    %c0_2 = arith.constant 0 : index
    %c0_3 = arith.constant 0 : index
    %4 = vector.load %arg5[%c0_2, %c0_3] : memref<256x768xf32, #tpu.memory_space<vmem>>, vector<256x768xf32>
    %c0_4 = arith.constant 0 : index
    %c0_5 = arith.constant 0 : index
    %5 = vector.load %arg6[%c0_4, %c0_5] : memref<1x768xf32, #tpu.memory_space<vmem>>, vector<1x768xf32>
    %c0_6 = arith.constant 0 : index
    %c0_7 = arith.constant 0 : index
    %6 = vector.load %arg7[%c0_6, %c0_7] : memref<256x256xf32, #tpu.memory_space<vmem>>, vector<256x256xf32>
    %c0_8 = arith.constant 0 : index
    %c0_9 = arith.constant 0 : index
    %7 = vector.load %arg8[%c0_8, %c0_9] : memref<1x256xf32, #tpu.memory_space<vmem>>, vector<1x256xf32>
    %c0_10 = arith.constant 0 : index
    %c0_11 = arith.constant 0 : index
    %8 = vector.load %arg3[%c0_10, %c0_11] : memref<8x128xi32, #tpu.memory_space<vmem>>, vector<8x128xi32>
    %c0_i32_12 = arith.constant 0 : i32
    %9 = vector.broadcast %c0_i32_12 : i32 to vector<8x128xi32>
    %10 = arith.cmpi sgt, %8, %9 : vector<8x128xi32>
    %11 = tpu.iota {dimensions = array<i32: 1>} : vector<8x128xi32>
    %12 = tpu.iota {dimensions = array<i32: 1>} : vector<8x128xi32>
    %c0_13 = arith.constant 0 : index
    %c0_14 = arith.constant 0 : index
    %c0_15 = arith.constant 0 : index
    %13 = vector.load %arg1[%c0_13, %c0_14, %c0_15] : memref<1x8x768xf32, #tpu.memory_space<vmem>>, vector<1x8x768xf32>
    %14 = vector.shape_cast %13 : vector<1x8x768xf32> to vector<8x768xf32>
    %c0_16 = arith.constant 0 : index
    %c0_17 = arith.constant 0 : index
    %c0_18 = arith.constant 0 : index
    %15 = vector.load %arg2[%c0_16, %c0_17, %c0_18] : memref<1x8x128xf32, #tpu.memory_space<vmem>>, vector<1x8x128xf32>
    %16 = vector.shape_cast %15 : vector<1x8x128xf32> to vector<8x128xf32>
    %cst = arith.constant dense<0.000000e+00> : vector<8x768xf32>
    %17 = tpu.matmul %3, %4, %cst {dimension_numbers = #tpu.dot_dimension_numbers<[1], [0], [0], [1], [0, 0, 1, 1], [], []>} : vector<8x256xf32>, vector<256x768xf32>, vector<8x768xf32> -> vector<8x768xf32>
    %18 = vector.broadcast %5 : vector<1x768xf32> to vector<8x768xf32>
    %19 = arith.addf %17, %18 : vector<8x768xf32>
    %20 = vector.extract_strided_slice %14 {offsets = [0, 0], sizes = [8, 512], strides = [1, 1]} : vector<8x768xf32> to vector<8x512xf32>
    %21 = vector.extract_strided_slice %19 {offsets = [0, 0], sizes = [8, 512], strides = [1, 1]} : vector<8x768xf32> to vector<8x512xf32>
    %22 = arith.addf %20, %21 : vector<8x512xf32>
    %23 = arith.negf %22 : vector<8x512xf32>
    %24 = math.exp %23 : vector<8x512xf32>
    %cst_19 = arith.constant 1.000000e+00 : f32
    %25 = vector.broadcast %cst_19 : f32 to vector<8x512xf32>
    %26 = arith.addf %25, %24 : vector<8x512xf32>
    %27 = arith.divf %25, %26 : vector<8x512xf32>
    %28 = vector.extract_strided_slice %27 {offsets = [0, 0], sizes = [8, 256], strides = [1, 1]} : vector<8x512xf32> to vector<8x256xf32>
    %29 = vector.extract_strided_slice %27 {offsets = [0, 256], sizes = [8, 256], strides = [1, 1]} : vector<8x512xf32> to vector<8x256xf32>
    %30 = vector.extract_strided_slice %14 {offsets = [0, 512], sizes = [8, 256], strides = [1, 1]} : vector<8x768xf32> to vector<8x256xf32>
    %31 = vector.extract_strided_slice %19 {offsets = [0, 512], sizes = [8, 256], strides = [1, 1]} : vector<8x768xf32> to vector<8x256xf32>
    %32 = arith.mulf %28, %31 : vector<8x256xf32>
    %33 = arith.addf %30, %32 : vector<8x256xf32>
    %34 = math.tanh %33 : vector<8x256xf32>
    %cst_20 = arith.constant 1.000000e+00 : f32
    %35 = vector.broadcast %cst_20 : f32 to vector<8x256xf32>
    %36 = arith.subf %35, %29 : vector<8x256xf32>
    %37 = arith.mulf %36, %34 : vector<8x256xf32>
    %38 = arith.mulf %29, %3 : vector<8x256xf32>
    %39 = arith.addf %37, %38 : vector<8x256xf32>
    %cst_21 = arith.constant dense<0.000000e+00> : vector<8x256xf32>
    %40 = tpu.matmul %39, %6, %cst_21 {dimension_numbers = #tpu.dot_dimension_numbers<[1], [0], [0], [1], [0, 0, 1, 1], [], []>} : vector<8x256xf32>, vector<256x256xf32>, vector<8x256xf32> -> vector<8x256xf32>
    %41 = vector.broadcast %7 : vector<1x256xf32> to vector<8x256xf32>
    %42 = arith.addf %40, %41 : vector<8x256xf32>
    %43 = vector.extract_strided_slice %42 {offsets = [0, 0], sizes = [8, 128], strides = [1, 1]} : vector<8x256xf32> to vector<8x128xf32>
    %cst_22 = arith.constant -3.40282347E+38 : f32
    %44 = vector.broadcast %cst_22 : f32 to vector<8x128xf32>
    %45 = arith.select %10, %43, %44 : vector<8x128xi1>, vector<8x128xf32>
    %46 = vector.extract_strided_slice %42 {offsets = [0, 128], sizes = [8, 1], strides = [1, 1]} : vector<8x256xf32> to vector<8x1xf32>
    %cst_23 = arith.constant dense<0xFF800000> : vector<8xf32>
    %47 = vector.multi_reduction <maximumf>, %45, %cst_23 [1] : vector<8x128xf32> to vector<8xf32>
    %48 = vector.shape_cast %47 : vector<8xf32> to vector<8x1xf32>
    %49 = vector.broadcast %48 : vector<8x1xf32> to vector<8x128xf32>
    %50 = arith.subf %45, %49 : vector<8x128xf32>
    %51 = math.exp %50 : vector<8x128xf32>
    %cst_24 = arith.constant dense<0.000000e+00> : vector<8xf32>
    %52 = vector.multi_reduction <add>, %51, %cst_24 [1] : vector<8x128xf32> to vector<8xf32>
    %53 = vector.shape_cast %52 : vector<8xf32> to vector<8x1xf32>
    %54 = math.log %53 : vector<8x1xf32>
    %55 = arith.addf %48, %54 : vector<8x1xf32>
    %56 = vector.broadcast %55 : vector<8x1xf32> to vector<8x128xf32>
    %57 = arith.subf %45, %56 : vector<8x128xf32>
    %58 = vector.broadcast %53 : vector<8x1xf32> to vector<8x128xf32>
    %59 = arith.divf %51, %58 : vector<8x128xf32>
    %60 = arith.addf %57, %16 : vector<8x128xf32>
    %cst_25 = arith.constant -3.40282347E+38 : f32
    %61 = vector.broadcast %cst_25 : f32 to vector<8x128xf32>
    %62 = arith.select %10, %60, %61 : vector<8x128xi1>, vector<8x128xf32>
    %cst_26 = arith.constant dense<0xFF800000> : vector<8xf32>
    %63 = vector.multi_reduction <maximumf>, %62, %cst_26 [1] : vector<8x128xf32> to vector<8xf32>
    %64 = vector.shape_cast %63 : vector<8xf32> to vector<8x1xf32>
    %65 = vector.broadcast %64 : vector<8x1xf32> to vector<8x128xf32>
    %66 = arith.cmpf oeq, %62, %65 : vector<8x128xf32>
    %c128_i32 = arith.constant 128 : i32
    %67 = vector.broadcast %c128_i32 : i32 to vector<8x128xi32>
    %68 = arith.select %66, %11, %67 : vector<8x128xi1>, vector<8x128xi32>
    %cst_27 = arith.constant dense<2147483647> : vector<8xi32>
    %69 = vector.multi_reduction <minsi>, %68, %cst_27 [1] : vector<8x128xi32> to vector<8xi32>
    %70 = vector.shape_cast %69 : vector<8xi32> to vector<8x1xi32>
    %71 = vector.broadcast %70 : vector<8x1xi32> to vector<8x128xi32>
    %72 = arith.cmpi eq, %11, %71 : vector<8x128xi32>
    %cst_28 = arith.constant 0.000000e+00 : f32
    %73 = vector.broadcast %cst_28 : f32 to vector<8x128xf32>
    %74 = arith.select %72, %57, %73 : vector<8x128xi1>, vector<8x128xf32>
    %cst_29 = arith.constant dense<0.000000e+00> : vector<8xf32>
    %75 = vector.multi_reduction <add>, %74, %cst_29 [1] : vector<8x128xf32> to vector<8xf32>
    %76 = vector.shape_cast %75 : vector<8xf32> to vector<8x1xf32>
    %77 = arith.mulf %57, %59 : vector<8x128xf32>
    %cst_30 = arith.constant 0.000000e+00 : f32
    %78 = vector.broadcast %cst_30 : f32 to vector<8x128xf32>
    %79 = arith.select %10, %77, %78 : vector<8x128xi1>, vector<8x128xf32>
    %cst_31 = arith.constant dense<0.000000e+00> : vector<8xf32>
    %80 = vector.multi_reduction <add>, %79, %cst_31 [1] : vector<8x128xf32> to vector<8xf32>
    %81 = vector.shape_cast %80 : vector<8xf32> to vector<8x1xf32>
    %cst_32 = arith.constant 0.000000e+00 : f32
    %82 = vector.broadcast %cst_32 : f32 to vector<8x1xf32>
    %83 = arith.subf %82, %81 : vector<8x1xf32>
    %c0_i32_33 = arith.constant 0 : i32
    %84 = vector.broadcast %c0_i32_33 : i32 to vector<8x128xi32>
    %85 = arith.cmpi eq, %12, %84 : vector<8x128xi32>
    %86 = arith.sitofp %70 : vector<8x1xi32> to vector<8x1xf32>
    %cst_34 = arith.constant 0.000000e+00 : f32
    %87 = vector.shape_cast %86 : vector<8x1xf32> to vector<8x1xf32>
    %88 = vector.broadcast %87 : vector<8x1xf32> to vector<8x128xf32>
    %89 = vector.broadcast %cst_34 : f32 to vector<8x128xf32>
    %90 = arith.select %85, %88, %89 : vector<8x128xi1>, vector<8x128xf32>
    %c1_i32 = arith.constant 1 : i32
    %91 = vector.broadcast %c1_i32 : i32 to vector<8x128xi32>
    %92 = arith.cmpi eq, %12, %91 : vector<8x128xi32>
    %cst_35 = arith.constant 0.000000e+00 : f32
    %93 = vector.shape_cast %76 : vector<8x1xf32> to vector<8x1xf32>
    %94 = vector.broadcast %93 : vector<8x1xf32> to vector<8x128xf32>
    %95 = vector.broadcast %cst_35 : f32 to vector<8x128xf32>
    %96 = arith.select %92, %94, %95 : vector<8x128xi1>, vector<8x128xf32>
    %97 = arith.addf %90, %96 : vector<8x128xf32>
    %c2_i32 = arith.constant 2 : i32
    %98 = vector.broadcast %c2_i32 : i32 to vector<8x128xi32>
    %99 = arith.cmpi eq, %12, %98 : vector<8x128xi32>
    %cst_36 = arith.constant 0.000000e+00 : f32
    %100 = vector.shape_cast %83 : vector<8x1xf32> to vector<8x1xf32>
    %101 = vector.broadcast %100 : vector<8x1xf32> to vector<8x128xf32>
    %102 = vector.broadcast %cst_36 : f32 to vector<8x128xf32>
    %103 = arith.select %99, %101, %102 : vector<8x128xi1>, vector<8x128xf32>
    %104 = arith.addf %97, %103 : vector<8x128xf32>
    %c3_i32 = arith.constant 3 : i32
    %105 = vector.broadcast %c3_i32 : i32 to vector<8x128xi32>
    %106 = arith.cmpi eq, %12, %105 : vector<8x128xi32>
    %cst_37 = arith.constant 0.000000e+00 : f32
    %107 = vector.shape_cast %46 : vector<8x1xf32> to vector<8x1xf32>
    %108 = vector.broadcast %107 : vector<8x1xf32> to vector<8x128xf32>
    %109 = vector.broadcast %cst_37 : f32 to vector<8x128xf32>
    %110 = arith.select %106, %108, %109 : vector<8x128xi1>, vector<8x128xf32>
    %111 = arith.addf %104, %110 : vector<8x128xf32>
    %c0_38 = arith.constant 0 : index
    %c0_39 = arith.constant 0 : index
    %c0_40 = arith.constant 0 : index
    %112 = vector.load %arg9[%c0_38, %c0_39, %c0_40] : memref<1x8x256xf32, #tpu.memory_space<vmem>>, vector<1x8x128xf32>
    %113 = vector.shape_cast %112 : vector<1x8x128xf32> to vector<8x128xf32>
    %114 = vector.shape_cast %59 : vector<8x128xf32> to vector<1x8x128xf32>
    tpu.vector_store %arg9[%c0_38, %c0_39, %c0_40], %114 {strides = array<i32>} : memref<1x8x256xf32, #tpu.memory_space<vmem>>, vector<1x8x128xf32>,
    %c0_41 = arith.constant 0 : index
    %c0_42 = arith.constant 0 : index
    %c128 = arith.constant 128 : index
    %115 = vector.load %arg9[%c0_41, %c0_42, %c128] : memref<1x8x256xf32, #tpu.memory_space<vmem>>, vector<1x8x128xf32>
    %116 = vector.shape_cast %115 : vector<1x8x128xf32> to vector<8x128xf32>
    %117 = vector.shape_cast %111 : vector<8x128xf32> to vector<1x8x128xf32>
    tpu.vector_store %arg9[%c0_41, %c0_42, %c128], %117 {strides = array<i32>} : memref<1x8x256xf32, #tpu.memory_space<vmem>>, vector<1x8x128xf32>,
    %c0_43 = arith.constant 0 : index
    %c0_44 = arith.constant 0 : index
    %118 = vector.load %arg10[%c0_43, %c0_44] : memref<8x256xf32, #tpu.memory_space<vmem>>, vector<8x256xf32>
    tpu.vector_store %arg10[%c0_43, %c0_44], %39 {strides = array<i32>} : memref<8x256xf32, #tpu.memory_space<vmem>>, vector<8x256xf32>,
    return
  }
  func.func @transform_0(%arg0: i32) -> (i32, i32, i32) {
    %c0_i32 = arith.constant 0 : i32
    %c0_i32_0 = arith.constant 0 : i32
    %c0_i32_1 = arith.constant 0 : i32
    return %arg0, %c0_i32, %c0_i32_0 : i32, i32, i32
  }
  func.func @transform_1(%arg0: i32) -> (i32, i32, i32) {
    %c0_i32 = arith.constant 0 : i32
    %c0_i32_0 = arith.constant 0 : i32
    %c0_i32_1 = arith.constant 0 : i32
    return %arg0, %c0_i32, %c0_i32_0 : i32, i32, i32
  }
  func.func @transform_2(%arg0: i32) -> (i32, i32) {
    %c0_i32 = arith.constant 0 : i32
    %c0_i32_0 = arith.constant 0 : i32
    %c0_i32_1 = arith.constant 0 : i32
    return %c0_i32, %c0_i32_0 : i32, i32
  }
  func.func @transform_3(%arg0: i32) -> (i32, i32) {
    %c0_i32 = arith.constant 0 : i32
    %c0_i32_0 = arith.constant 0 : i32
    %c0_i32_1 = arith.constant 0 : i32
    return %c0_i32, %c0_i32_0 : i32, i32
  }
  func.func @transform_4(%arg0: i32) -> (i32, i32) {
    %c0_i32 = arith.constant 0 : i32
    %c0_i32_0 = arith.constant 0 : i32
    %c0_i32_1 = arith.constant 0 : i32
    return %c0_i32, %c0_i32_0 : i32, i32
  }
  func.func @transform_5(%arg0: i32) -> (i32, i32) {
    %c0_i32 = arith.constant 0 : i32
    %c0_i32_0 = arith.constant 0 : i32
    %c0_i32_1 = arith.constant 0 : i32
    return %c0_i32, %c0_i32_0 : i32, i32
  }
  func.func @transform_6(%arg0: i32) -> (i32, i32) {
    %c0_i32 = arith.constant 0 : i32
    %c0_i32_0 = arith.constant 0 : i32
    %c0_i32_1 = arith.constant 0 : i32
    return %c0_i32, %c0_i32_0 : i32, i32
  }
  func.func @transform_7(%arg0: i32) -> (i32, i32) {
    %c0_i32 = arith.constant 0 : i32
    %c0_i32_0 = arith.constant 0 : i32
    %c0_i32_1 = arith.constant 0 : i32
    return %c0_i32, %c0_i32_0 : i32, i32
  }
  func.func @transform_8(%arg0: i32) -> (i32, i32, i32) {
    %c0_i32 = arith.constant 0 : i32
    %c0_i32_0 = arith.constant 0 : i32
    %c0_i32_1 = arith.constant 0 : i32
    return %arg0, %c0_i32, %c0_i32_0 : i32, i32, i32
  }
  func.func @transform_9(%arg0: i32) -> (i32, i32) {
    %c0_i32 = arith.constant 0 : i32
    %c0_i32_0 = arith.constant 0 : i32
    %c0_i32_1 = arith.constant 0 : i32
    return %c0_i32, %c0_i32_0 : i32, i32
  }
}

</mosaic_0001>

<llo_original>
// kernel: tpu_custom_call.1
$region0: #{tpu_custom_call.1}
  #allocation0 [shape = 'u32[]', space=smem, size = 0x4, offset = 0x4, fixed_abs, tag = 'smem constant byte address 0x4 - core index']
  #allocation1 [shape = 'u32[144,128]{1,0:T(1,128)}', space=vmem, size = 0x12000, scoped, tag = 'internal scratch']
  %s0 = inlined_call_operand.hbm [shape: f32[1,8,768], index: 0, kind: input, shape index: {}]
  %s1 = inlined_call_operand.hbm [shape: f32[1,8,128], index: 1, kind: input, shape index: {}]
  %s2 = inlined_call_operand.hbm [shape: s32[8,128], index: 2, kind: input, shape index: {}]
  %s3 = inlined_call_operand.hbm [shape: f32[8,256], index: 3, kind: input, shape index: {}]
  %s4 = inlined_call_operand.hbm [shape: f32[256,768], index: 4, kind: input, shape index: {}]
  %s5 = inlined_call_operand.vmem [shape: f32[1,768], index: 5, kind: input, shape index: {}]
  %s6 = inlined_call_operand.hbm [shape: f32[256,256], index: 6, kind: input, shape index: {}]
  %s7 = inlined_call_operand.vmem [shape: f32[1,256], index: 7, kind: input, shape index: {}]
  %s8 = inlined_call_operand.hbm [shape: f32[1,8,256], index: 8, kind: output, shape index: {0}]
  %s9 = inlined_call_operand.hbm [shape: f32[8,256], index: 9, kind: output, shape index: {1}]
  %10 = xla_tuple %s8, %s9
  %s11 = sld [smem:[#allocation0]]
  $region78: #{tpu_custom_call.1} parent=0
    _
  %s13 = ssub.s32 1, %s11
  %s14 = scalar_select 0, %s13, %s11
  $region1: #{tpu_custom_call.1} parent=0
    #allocation2 [shape = 'u8[24576]{0}', space=vmem, size = 0x6000, scoped, tag = 'input window, operand 0, single buffered']
    #allocation3 [shape = 's32[1]{0}', space=sflag, size = 0x4, scoped, tag = 'scoped memory for tpu_custom_call.1']
    #allocation4 [shape = 's32[1]{0}', space=sflag, size = 0x4, scoped, tag = 'scoped memory for tpu_custom_call.1']
    #allocation5 [shape = 'u8[4096]{0}', space=vmem, size = 0x1000, scoped, tag = 'input window, operand 1, single buffered']
    #allocation6 [shape = 's32[1]{0}', space=sflag, size = 0x4, scoped, tag = 'scoped memory for tpu_custom_call.1']
    #allocation7 [shape = 'u8[4096]{0}', space=vmem, size = 0x1000, scoped, tag = 'input window, operand 2, single buffered']
    #allocation8 [shape = 'u8[8192]{0}', space=vmem, size = 0x2000, scoped, tag = 'input window, operand 3, single buffered']
    #allocation9 [shape = 's32[1]{0}', space=sflag, size = 0x4, scoped, tag = 'scoped memory for tpu_custom_call.1']
    #allocation10 [shape = 'u8[786432]{0}', space=vmem, size = 0xc0000, scoped, tag = 'input window, operand 4, single buffered']
    #allocation11 [shape = 'u8[262144]{0}', space=vmem, size = 0x40000, scoped, tag = 'input window, operand 6, single buffered']
    #allocation12 [shape = 's32[1]{0}', space=sflag, size = 0x4, scoped, tag = 'scoped memory for tpu_custom_call.1']
    #allocation13 [shape = 'u8[8192]{0}', space=vmem, size = 0x2000, scoped, tag = 'output window, operand 0, single buffered']
    #allocation14 [shape = 'u8[8192]{0}', space=vmem, size = 0x2000, scoped, tag = 'output window, operand 1, single buffered']
    #allocation15 [shape = 's32[1]{0}', space=sflag, size = 0x4, scoped, tag = 'scoped memory for tpu_custom_call.1']
    %15 = vsyncpa [#allocation3], 0
    %16 = vsyncpa [#allocation6], 0
    %17 = vsyncpa [#allocation9], 0
    %18 = vsyncpa [#allocation12], 0
    %19 = vsyncpa [#allocation4], 0
    %20 = vsyncpa [#allocation15], 0
    // Predicated region
    $region2: #{tpu_custom_call.1} parent=1 // pred_check
      _
    $region3: #{tpu_custom_call.1} parent=1 // pred_check_branch
      %22 = sbr.rel (0) target = $region5
    $region4: #{tpu_custom_call.1} parent=1 // pred_region
      %s24 = ssub.s32 768, 768
      %25 = vsyncadd [#allocation3], %s24
      %s27 = sshll.u32 [#allocation2], 4
      %s28 = int_to_ptr.vmem [resolvable:$true] %s27
      %30 = dma.hbm_to_vmem [thread:$0]  %s0, 768, %s28, [#allocation3]
    $region5: #{tpu_custom_call.1} parent=1 // pred_fallthru
      _
    // Predicated region
    $region6: #{tpu_custom_call.1} parent=1 // pred_check
      _
    $region7: #{tpu_custom_call.1} parent=1 // pred_check_branch
      %32 = sbr.rel (0) target = $region9
    $region8: #{tpu_custom_call.1} parent=1 // pred_region
      %s34 = ssub.s32 128, 128
      %35 = vsyncadd [#allocation6], %s34
      %s37 = sshll.u32 [#allocation5], 4
      %s38 = int_to_ptr.vmem [resolvable:$true] %s37
      %40 = dma.hbm_to_vmem [thread:$0]  %s1, 128, %s38, [#allocation6]
    $region9: #{tpu_custom_call.1} parent=1 // pred_fallthru
      _
    // Predicated region
    $region10: #{tpu_custom_call.1} parent=1 // pred_check
      _
    $region11: #{tpu_custom_call.1} parent=1 // pred_check_branch
      %42 = sbr.rel (0) target = $region13
    $region12: #{tpu_custom_call.1} parent=1 // pred_region
      %s44 = ssub.s32 128, 128
      %45 = vsyncadd [#allocation6], %s44
      %s47 = sshll.u32 [#allocation7], 4
      %s48 = int_to_ptr.vmem [resolvable:$true] %s47
      %50 = dma.hbm_to_vmem [thread:$0]  %s2, 128, %s48, [#allocation6]
    $region13: #{tpu_custom_call.1} parent=1 // pred_fallthru
      _
    // Predicated region
    $region14: #{tpu_custom_call.1} parent=1 // pred_check
      _
    $region15: #{tpu_custom_call.1} parent=1 // pred_check_branch
      %52 = sbr.rel (0) target = $region17
    $region16: #{tpu_custom_call.1} parent=1 // pred_region
      %s54 = ssub.s32 256, 256
      %55 = vsyncadd [#allocation9], %s54
      %s57 = sshll.u32 [#allocation8], 4
      %s58 = int_to_ptr.vmem [resolvable:$true] %s57
      %60 = dma.hbm_to_vmem [thread:$0]  %s3, 256, %s58, [#allocation9]
    $region17: #{tpu_custom_call.1} parent=1 // pred_fallthru
      _
    // Predicated region
    $region18: #{tpu_custom_call.1} parent=1 // pred_check
      _
    $region19: #{tpu_custom_call.1} parent=1 // pred_check_branch
      %62 = sbr.rel (0) target = $region21
    $region20: #{tpu_custom_call.1} parent=1 // pred_region
      %s64 = ssub.s32 24576, 24576
      %65 = vsyncadd [#allocation9], %s64
      %s66 = sshll.u32 [#allocation10], 4
      %s67 = int_to_ptr.vmem [resolvable:$true] %s66
      %72 = dma.hbm_to_vmem [thread:$0]  %s4, 24576, %s67, [#allocation9], 768, 768, 48
    $region21: #{tpu_custom_call.1} parent=1 // pred_fallthru
      _
    // Predicated region
    $region22: #{tpu_custom_call.1} parent=1 // pred_check
      _
    $region23: #{tpu_custom_call.1} parent=1 // pred_check_branch
      %74 = sbr.rel (0) target = $region25
    $region24: #{tpu_custom_call.1} parent=1 // pred_region
      _
    $region25: #{tpu_custom_call.1} parent=1 // pred_fallthru
      _
    // Predicated region
    $region26: #{tpu_custom_call.1} parent=1 // pred_check
      _
    $region27: #{tpu_custom_call.1} parent=1 // pred_check_branch
      %76 = sbr.rel (0) target = $region29
    $region28: #{tpu_custom_call.1} parent=1 // pred_region
      %s78 = ssub.s32 8192, 8192
      %79 = vsyncadd [#allocation12], %s78
      %s80 = sshll.u32 [#allocation11], 4
      %s81 = int_to_ptr.vmem [resolvable:$true] %s80
      %86 = dma.hbm_to_vmem [thread:$0]  %s6, 8192, %s81, [#allocation12], 256, 256, 16
    $region29: #{tpu_custom_call.1} parent=1 // pred_fallthru
      _
    // Predicated region
    $region30: #{tpu_custom_call.1} parent=1 // pred_check
      _
    $region31: #{tpu_custom_call.1} parent=1 // pred_check_branch
      %88 = sbr.rel (0) target = $region33
    $region32: #{tpu_custom_call.1} parent=1 // pred_region
      _
    $region33: #{tpu_custom_call.1} parent=1 // pred_fallthru
      _
    // Predicated region
    $region34: #{tpu_custom_call.1} parent=1 // pred_check
      _
    $region35: #{tpu_custom_call.1} parent=1 // pred_check_branch
      %90 = sbr.rel (0) target = $region37
    $region36: #{tpu_custom_call.1} parent=1 // pred_region
      %91 = dma.done [#allocation3], 768
    $region37: #{tpu_custom_call.1} parent=1 // pred_fallthru
      _
    // Predicated region
    $region38: #{tpu_custom_call.1} parent=1 // pred_check
      _
    $region39: #{tpu_custom_call.1} parent=1 // pred_check_branch
      %93 = sbr.rel (0) target = $region41
    $region40: #{tpu_custom_call.1} parent=1 // pred_region
      %94 = dma.done [#allocation6], 128
    $region41: #{tpu_custom_call.1} parent=1 // pred_fallthru
      _
    // Predicated region
    $region42: #{tpu_custom_call.1} parent=1 // pred_check
      _
    $region43: #{tpu_custom_call.1} parent=1 // pred_check_branch
      %96 = sbr.rel (0) target = $region45
    $region44: #{tpu_custom_call.1} parent=1 // pred_region
      %97 = dma.done [#allocation6], 128
    $region45: #{tpu_custom_call.1} parent=1 // pred_fallthru
      _
    // Predicated region
    $region46: #{tpu_custom_call.1} parent=1 // pred_check
      _
    $region47: #{tpu_custom_call.1} parent=1 // pred_check_branch
      %99 = sbr.rel (0) target = $region49
    $region48: #{tpu_custom_call.1} parent=1 // pred_region
      %100 = dma.done [#allocation9], 256
    $region49: #{tpu_custom_call.1} parent=1 // pred_fallthru
      _
    // Predicated region
    $region50: #{tpu_custom_call.1} parent=1 // pred_check
      _
    $region51: #{tpu_custom_call.1} parent=1 // pred_check_branch
      %102 = sbr.rel (0) target = $region53
    $region52: #{tpu_custom_call.1} parent=1 // pred_region
      %103 = dma.done [#allocation9], 24576
    $region53: #{tpu_custom_call.1} parent=1 // pred_fallthru
      _
    // Predicated region
    $region54: #{tpu_custom_call.1} parent=1 // pred_check
      _
    $region55: #{tpu_custom_call.1} parent=1 // pred_check_branch
      %105 = sbr.rel (0) target = $region57
    $region56: #{tpu_custom_call.1} parent=1 // pred_region
      %106 = dma.done [#allocation12], 8192
    $region57: #{tpu_custom_call.1} parent=1 // pred_fallthru
      _
    %p107 = scmp.eq.s32.totalorder 0, 0
    // Predicated region
    $region58: #{tpu_custom_call.1} parent=1 // pred_check
      %p108 = pneg %p107
    $region59: #{tpu_custom_call.1} parent=1 // pred_check_branch
      %110 = sbr.rel (%p108) target = $region61
    $region60: #{tpu_custom_call.1} parent=1 // pred_region
      %v111 = vld [vmem:[#allocation8] sm:$0xff]
      %v112 = vld [vmem:[#allocation8 + $0x8] sm:$0xff]
      %113 = vst [vmem:[#allocation14] sm:$0xff] %v111
      %114 = vst [vmem:[#allocation14 + $0x8] sm:$0xff] %v112
    $region61: #{tpu_custom_call.1} parent=1 // pred_fallthru
      _
    %v115 = vld [vmem:[#allocation14] sm:$0xff]
    %v116 = vld [vmem:[#allocation14 + $0x8] sm:$0xff]
    %v117 = vld [vmem:[#allocation10] sm:$0xff]
    %v118 = vld [vmem:[#allocation10 + $0x8] sm:$0xff]
    %v119 = vld [vmem:[#allocation10 + $0x10] sm:$0xff]
    %v120 = vld [vmem:[#allocation10 + $0x18] sm:$0xff]
    %v121 = vld [vmem:[#allocation10 + $0x20] sm:$0xff]
    %v122 = vld [vmem:[#allocation10 + $0x28] sm:$0xff]
    %v123 = vld [vmem:[#allocation10 + $0x30] sm:$0xff]
    %v124 = vld [vmem:[#allocation10 + $0x38] sm:$0xff]
    %v125 = vld [vmem:[#allocation10 + $0x40] sm:$0xff]
    %v126 = vld [vmem:[#allocation10 + $0x48] sm:$0xff]
    %v127 = vld [vmem:[#allocation10 + $0x50] sm:$0xff]
    %v128 = vld [vmem:[#allocation10 + $0x58] sm:$0xff]
    %v129 = vld [vmem:[#allocation10 + $0x60] sm:$0xff]
    %v130 = vld [vmem:[#allocation10 + $0x68] sm:$0xff]
    %v131 = vld [vmem:[#allocation10 + $0x70] sm:$0xff]
    %v132 = vld [vmem:[#allocation10 + $0x78] sm:$0xff]
    %v133 = vld [vmem:[#allocation10 + $0x80] sm:$0xff]
    %v134 = vld [vmem:[#allocation10 + $0x88] sm:$0xff]
    %v135 = vld [vmem:[#allocation10 + $0x90] sm:$0xff]
    %v136 = vld [vmem:[#allocation10 + $0x98] sm:$0xff]
    %v137 = vld [vmem:[#allocation10 + $0xa0] sm:$0xff]
    %v138 = vld [vmem:[#allocation10 + $0xa8] sm:$0xff]
    %v139 = vld [vmem:[#allocation10 + $0xb0] sm:$0xff]
    %v140 = vld [vmem:[#allocation10 + $0xb8] sm:$0xff]
    %v141 = vld [vmem:[#allocation10 + $0xc0] sm:$0xff]
    %v142 = vld [vmem:[#allocation10 + $0xc8] sm:$0xff]
    %v143 = vld [vmem:[#allocation10 + $0xd0] sm:$0xff]
    %v144 = vld [vmem:[#allocation10 + $0xd8] sm:$0xff]
    %v145 = vld [vmem:[#allocation10 + $0xe0] sm:$0xff]
    %v146 = vld [vmem:[#allocation10 + $0xe8] sm:$0xff]
    %v147 = vld [vmem:[#allocation10 + $0xf0] sm:$0xff]
    %v148 = vld [vmem:[#allocation10 + $0xf8] sm:$0xff]
    %v149 = vld [vmem:[#allocation10 + $0x100] sm:$0xff]
    %v150 = vld [vmem:[#allocation10 + $0x108] sm:$0xff]
    %v151 = vld [vmem:[#allocation10 + $0x110] sm:$0xff]
    %v152 = vld [vmem:[#allocation10 + $0x118] sm:$0xff]
    %v153 = vld [vmem:[#allocation10 + $0x120] sm:$0xff]
    %v154 = vld [vmem:[#allocation10 + $0x128] sm:$0xff]
    %v155 = vld [vmem:[#allocation10 + $0x130] sm:$0xff]
    %v156 = vld [vmem:[#allocation10 + $0x138] sm:$0xff]
    %v157 = vld [vmem:[#allocation10 + $0x140] sm:$0xff]
    %v158 = vld [vmem:[#allocation10 + $0x148] sm:$0xff]
    %v159 = vld [vmem:[#allocation10 + $0x150] sm:$0xff]
    %v160 = vld [vmem:[#allocation10 + $0x158] sm:$0xff]
    %v161 = vld [vmem:[#allocation10 + $0x160] sm:$0xff]
    %v162 = vld [vmem:[#allocation10 + $0x168] sm:$0xff]
    %v163 = vld [vmem:[#allocation10 + $0x170] sm:$0xff]
    %v164 = vld [vmem:[#allocation10 + $0x178] sm:$0xff]
    %v165 = vld [vmem:[#allocation10 + $0x180] sm:$0xff]
    %v166 = vld [vmem:[#allocation10 + $0x188] sm:$0xff]
    %v167 = vld [vmem:[#allocation10 + $0x190] sm:$0xff]
    %v168 = vld [vmem:[#allocation10 + $0x198] sm:$0xff]
    %v169 = vld [vmem:[#allocation10 + $0x1a0] sm:$0xff]
    %v170 = vld [vmem:[#allocation10 + $0x1a8] sm:$0xff]
    %v171 = vld [vmem:[#allocation10 + $0x1b0] sm:$0xff]
    %v172 = vld [vmem:[#allocation10 + $0x1b8] sm:$0xff]
    %v173 = vld [vmem:[#allocation10 + $0x1c0] sm:$0xff]
    %v174 = vld [vmem:[#allocation10 + $0x1c8] sm:$0xff]
    %v175 = vld [vmem:[#allocation10 + $0x1d0] sm:$0xff]
    %v176 = vld [vmem:[#allocation10 + $0x1d8] sm:$0xff]
    %v177 = vld [vmem:[#allocation10 + $0x1e0] sm:$0xff]
    %v178 = vld [vmem:[#allocation10 + $0x1e8] sm:$0xff]
    %v179 = vld [vmem:[#allocation10 + $0x1f0] sm:$0xff]
    %v180 = vld [vmem:[#allocation10 + $0x1f8] sm:$0xff]
    %v181 = vld [vmem:[#allocation10 + $0x200] sm:$0xff]
    %v182 = vld [vmem:[#allocation10 + $0x208] sm:$0xff]
    %v183 = vld [vmem:[#allocation10 + $0x210] sm:$0xff]
    %v184 = vld [vmem:[#allocation10 + $0x218] sm:$0xff]
    %v185 = vld [vmem:[#allocation10 + $0x220] sm:$0xff]
    %v186 = vld [vmem:[#allocation10 + $0x228] sm:$0xff]
    %v187 = vld [vmem:[#allocation10 + $0x230] sm:$0xff]
    %v188 = vld [vmem:[#allocation10 + $0x238] sm:$0xff]
    %v189 = vld [vmem:[#allocation10 + $0x240] sm:$0xff]
    %v190 = vld [vmem:[#allocation10 + $0x248] sm:$0xff]
    %v191 = vld [vmem:[#allocation10 + $0x250] sm:$0xff]
    %v192 = vld [vmem:[#allocation10 + $0x258] sm:$0xff]
    %v193 = vld [vmem:[#allocation10 + $0x260] sm:$0xff]
    %v194 = vld [vmem:[#allocation10 + $0x268] sm:$0xff]
    %v195 = vld [vmem:[#allocation10 + $0x270] sm:$0xff]
    %v196 = vld [vmem:[#allocation10 + $0x278] sm:$0xff]
    %v197 = vld [vmem:[#allocation10 + $0x280] sm:$0xff]
    %v198 = vld [vmem:[#allocation10 + $0x288] sm:$0xff]
    %v199 = vld [vmem:[#allocation10 + $0x290] sm:$0xff]
    %v200 = vld [vmem:[#allocation10 + $0x298] sm:$0xff]
    %v201 = vld [vmem:[#allocation10 + $0x2a0] sm:$0xff]
    %v202 = vld [vmem:[#allocation10 + $0x2a8] sm:$0xff]
    %v203 = vld [vmem:[#allocation10 + $0x2b0] sm:$0xff]
    %v204 = vld [vmem:[#allocation10 + $0x2b8] sm:$0xff]
    %v205 = vld [vmem:[#allocation10 + $0x2c0] sm:$0xff]
    %v206 = vld [vmem:[#allocation10 + $0x2c8] sm:$0xff]
    %v207 = vld [vmem:[#allocation10 + $0x2d0] sm:$0xff]
    %v208 = vld [vmem:[#allocation10 + $0x2d8] sm:$0xff]
    %v209 = vld [vmem:[#allocation10 + $0x2e0] sm:$0xff]
    %v210 = vld [vmem:[#allocation10 + $0x2e8] sm:$0xff]
    %v211 = vld [vmem:[#allocation10 + $0x2f0] sm:$0xff]
    %v212 = vld [vmem:[#allocation10 + $0x2f8] sm:$0xff]
    %v213 = vld [vmem:[#allocation10 + $0x300] sm:$0xff]
    %v214 = vld [vmem:[#allocation10 + $0x308] sm:$0xff]
    %v215 = vld [vmem:[#allocation10 + $0x310] sm:$0xff]
    %v216 = vld [vmem:[#allocation10 + $0x318] sm:$0xff]
    %v217 = vld [vmem:[#allocation10 + $0x320] sm:$0xff]
    %v218 = vld [vmem:[#allocation10 + $0x328] sm:$0xff]
    %v219 = vld [vmem:[#allocation10 + $0x330] sm:$0xff]
    %v220 = vld [vmem:[#allocation10 + $0x338] sm:$0xff]
    %v221 = vld [vmem:[#allocation10 + $0x340] sm:$0xff]
    %v222 = vld [vmem:[#allocation10 + $0x348] sm:$0xff]
    %v223 = vld [vmem:[#allocation10 + $0x350] sm:$0xff]
    %v224 = vld [vmem:[#allocation10 + $0x358] sm:$0xff]
    %v225 = vld [vmem:[#allocation10 + $0x360] sm:$0xff]
    %v226 = vld [vmem:[#allocation10 + $0x368] sm:$0xff]
    %v227 = vld [vmem:[#allocation10 + $0x370] sm:$0xff]
    %v228 = vld [vmem:[#allocation10 + $0x378] sm:$0xff]
    %v229 = vld [vmem:[#allocation10 + $0x380] sm:$0xff]
    %v230 = vld [vmem:[#allocation10 + $0x388] sm:$0xff]
    %v231 = vld [vmem:[#allocation10 + $0x390] sm:$0xff]
    %v232 = vld [vmem:[#allocation10 + $0x398] sm:$0xff]
    %v233 = vld [vmem:[#allocation10 + $0x3a0] sm:$0xff]
    %v234 = vld [vmem:[#allocation10 + $0x3a8] sm:$0xff]
    %v235 = vld [vmem:[#allocation10 + $0x3b0] sm:$0xff]
    %v236 = vld [vmem:[#allocation10 + $0x3b8] sm:$0xff]
    %v237 = vld [vmem:[#allocation10 + $0x3c0] sm:$0xff]
    %v238 = vld [vmem:[#allocation10 + $0x3c8] sm:$0xff]
    %v239 = vld [vmem:[#allocation10 + $0x3d0] sm:$0xff]
    %v240 = vld [vmem:[#allocation10 + $0x3d8] sm:$0xff]
    %v241 = vld [vmem:[#allocation10 + $0x3e0] sm:$0xff]
    %v242 = vld [vmem:[#allocation10 + $0x3e8] sm:$0xff]
    %v243 = vld [vmem:[#allocation10 + $0x3f0] sm:$0xff]
    %v244 = vld [vmem:[#allocation10 + $0x3f8] sm:$0xff]
    %v245 = vld [vmem:[#allocation10 + $0x400] sm:$0xff]
    %v246 = vld [vmem:[#allocation10 + $0x408] sm:$0xff]
    %v247 = vld [vmem:[#allocation10 + $0x410] sm:$0xff]
    %v248 = vld [vmem:[#allocation10 + $0x418] sm:$0xff]
    %v249 = vld [vmem:[#allocation10 + $0x420] sm:$0xff]
    %v250 = vld [vmem:[#allocation10 + $0x428] sm:$0xff]
    %v251 = vld [vmem:[#allocation10 + $0x430] sm:$0xff]
    %v252 = vld [vmem:[#allocation10 + $0x438] sm:$0xff]
    %v253 = vld [vmem:[#allocation10 + $0x440] sm:$0xff]
    %v254 = vld [vmem:[#allocation10 + $0x448] sm:$0xff]
    %v255 = vld [vmem:[#allocation10 + $0x450] sm:$0xff]
    %v256 = vld [vmem:[#allocation10 + $0x458] sm:$0xff]
    %v257 = vld [vmem:[#allocation10 + $0x460] sm:$0xff]
    %v258 = vld [vmem:[#allocation10 + $0x468] sm:$0xff]
    %v259 = vld [vmem:[#allocation10 + $0x470] sm:$0xff]
    %v260 = vld [vmem:[#allocation10 + $0x478] sm:$0xff]
    %v261 = vld [vmem:[#allocation10 + $0x480] sm:$0xff]
    %v262 = vld [vmem:[#allocation10 + $0x488] sm:$0xff]
    %v263 = vld [vmem:[#allocation10 + $0x490] sm:$0xff]
    %v264 = vld [vmem:[#allocation10 + $0x498] sm:$0xff]
    %v265 = vld [vmem:[#allocation10 + $0x4a0] sm:$0xff]
    %v266 = vld [vmem:[#allocation10 + $0x4a8] sm:$0xff]
    %v267 = vld [vmem:[#allocation10 + $0x4b0] sm:$0xff]
    %v268 = vld [vmem:[#allocation10 + $0x4b8] sm:$0xff]
    %v269 = vld [vmem:[#allocation10 + $0x4c0] sm:$0xff]
    %v270 = vld [vmem:[#allocation10 + $0x4c8] sm:$0xff]
    %v271 = vld [vmem:[#allocation10 + $0x4d0] sm:$0xff]
    %v272 = vld [vmem:[#allocation10 + $0x4d8] sm:$0xff]
    %v273 = vld [vmem:[#allocation10 + $0x4e0] sm:$0xff]
    %v274 = vld [vmem:[#allocation10 + $0x4e8] sm:$0xff]
    %v275 = vld [vmem:[#allocation10 + $0x4f0] sm:$0xff]
    %v276 = vld [vmem:[#allocation10 + $0x4f8] sm:$0xff]
    %v277 = vld [vmem:[#allocation10 + $0x500] sm:$0xff]
    %v278 = vld [vmem:[#allocation10 + $0x508] sm:$0xff]
    %v279 = vld [vmem:[#allocation10 + $0x510] sm:$0xff]
    %v280 = vld [vmem:[#allocation10 + $0x518] sm:$0xff]
    %v281 = vld [vmem:[#allocation10 + $0x520] sm:$0xff]
    %v282 = vld [vmem:[#allocation10 + $0x528] sm:$0xff]
    %v283 = vld [vmem:[#allocation10 + $0x530] sm:$0xff]
    %v284 = vld [vmem:[#allocation10 + $0x538] sm:$0xff]
    %v285 = vld [vmem:[#allocation10 + $0x540] sm:$0xff]
    %v286 = vld [vmem:[#allocation10 + $0x548] sm:$0xff]
    %v287 = vld [vmem:[#allocation10 + $0x550] sm:$0xff]
    %v288 = vld [vmem:[#allocation10 + $0x558] sm:$0xff]
    %v289 = vld [vmem:[#allocation10 + $0x560] sm:$0xff]
    %v290 = vld [vmem:[#allocation10 + $0x568] sm:$0xff]
    %v291 = vld [vmem:[#allocation10 + $0x570] sm:$0xff]
    %v292 = vld [vmem:[#allocation10 + $0x578] sm:$0xff]
    %v293 = vld [vmem:[#allocation10 + $0x580] sm:$0xff]
    %v294 = vld [vmem:[#allocation10 + $0x588] sm:$0xff]
    %v295 = vld [vmem:[#allocation10 + $0x590] sm:$0xff]
    %v296 = vld [vmem:[#allocation10 + $0x598] sm:$0xff]
    %v297 = vld [vmem:[#allocation10 + $0x5a0] sm:$0xff]
    %v298 = vld [vmem:[#allocation10 + $0x5a8] sm:$0xff]
    %v299 = vld [vmem:[#allocation10 + $0x5b0] sm:$0xff]
    %v300 = vld [vmem:[#allocation10 + $0x5b8] sm:$0xff]
    %v301 = vld [vmem:[#allocation10 + $0x5c0] sm:$0xff]
    %v302 = vld [vmem:[#allocation10 + $0x5c8] sm:$0xff]
    %v303 = vld [vmem:[#allocation10 + $0x5d0] sm:$0xff]
    %v304 = vld [vmem:[#allocation10 + $0x5d8] sm:$0xff]
    %v305 = vld [vmem:[#allocation10 + $0x5e0] sm:$0xff]
    %v306 = vld [vmem:[#allocation10 + $0x5e8] sm:$0xff]
    %v307 = vld [vmem:[#allocation10 + $0x5f0] sm:$0xff]
    %v308 = vld [vmem:[#allocation10 + $0x5f8] sm:$0xff]
    %v309 = vld [vmem:[%s5] sm:$0x3f]
    %v310 = vld [vmem:[#allocation11] sm:$0xff]
    %v311 = vld [vmem:[#allocation11 + $0x8] sm:$0xff]
    %v312 = vld [vmem:[#allocation11 + $0x10] sm:$0xff]
    %v313 = vld [vmem:[#allocation11 + $0x18] sm:$0xff]
    %v314 = vld [vmem:[#allocation11 + $0x20] sm:$0xff]
    %v315 = vld [vmem:[#allocation11 + $0x28] sm:$0xff]
    %v316 = vld [vmem:[#allocation11 + $0x30] sm:$0xff]
    %v317 = vld [vmem:[#allocation11 + $0x38] sm:$0xff]
    %v318 = vld [vmem:[#allocation11 + $0x40] sm:$0xff]
    %v319 = vld [vmem:[#allocation11 + $0x48] sm:$0xff]
    %v320 = vld [vmem:[#allocation11 + $0x50] sm:$0xff]
    %v321 = vld [vmem:[#allocation11 + $0x58] sm:$0xff]
    %v322 = vld [vmem:[#allocation11 + $0x60] sm:$0xff]
    %v323 = vld [vmem:[#allocation11 + $0x68] sm:$0xff]
    %v324 = vld [vmem:[#allocation11 + $0x70] sm:$0xff]
    %v325 = vld [vmem:[#allocation11 + $0x78] sm:$0xff]
    %v326 = vld [vmem:[#allocation11 + $0x80] sm:$0xff]
    %v327 = vld [vmem:[#allocation11 + $0x88] sm:$0xff]
    %v328 = vld [vmem:[#allocation11 + $0x90] sm:$0xff]
    %v329 = vld [vmem:[#allocation11 + $0x98] sm:$0xff]
    %v330 = vld [vmem:[#allocation11 + $0xa0] sm:$0xff]
    %v331 = vld [vmem:[#allocation11 + $0xa8] sm:$0xff]
    %v332 = vld [vmem:[#allocation11 + $0xb0] sm:$0xff]
    %v333 = vld [vmem:[#allocation11 + $0xb8] sm:$0xff]
    %v334 = vld [vmem:[#allocation11 + $0xc0] sm:$0xff]
    %v335 = vld [vmem:[#allocation11 + $0xc8] sm:$0xff]
    %v336 = vld [vmem:[#allocation11 + $0xd0] sm:$0xff]
    %v337 = vld [vmem:[#allocation11 + $0xd8] sm:$0xff]
    %v338 = vld [vmem:[#allocation11 + $0xe0] sm:$0xff]
    %v339 = vld [vmem:[#allocation11 + $0xe8] sm:$0xff]
    %v340 = vld [vmem:[#allocation11 + $0xf0] sm:$0xff]
    %v341 = vld [vmem:[#allocation11 + $0xf8] sm:$0xff]
    %v342 = vld [vmem:[#allocation11 + $0x100] sm:$0xff]
    %v343 = vld [vmem:[#allocation11 + $0x108] sm:$0xff]
    %v344 = vld [vmem:[#allocation11 + $0x110] sm:$0xff]
    %v345 = vld [vmem:[#allocation11 + $0x118] sm:$0xff]
    %v346 = vld [vmem:[#allocation11 + $0x120] sm:$0xff]
    %v347 = vld [vmem:[#allocation11 + $0x128] sm:$0xff]
    %v348 = vld [vmem:[#allocation11 + $0x130] sm:$0xff]
    %v349 = vld [vmem:[#allocation11 + $0x138] sm:$0xff]
    %v350 = vld [vmem:[#allocation11 + $0x140] sm:$0xff]
    %v351 = vld [vmem:[#allocation11 + $0x148] sm:$0xff]
    %v352 = vld [vmem:[#allocation11 + $0x150] sm:$0xff]
    %v353 = vld [vmem:[#allocation11 + $0x158] sm:$0xff]
    %v354 = vld [vmem:[#allocation11 + $0x160] sm:$0xff]
    %v355 = vld [vmem:[#allocation11 + $0x168] sm:$0xff]
    %v356 = vld [vmem:[#allocation11 + $0x170] sm:$0xff]
    %v357 = vld [vmem:[#allocation11 + $0x178] sm:$0xff]
    %v358 = vld [vmem:[#allocation11 + $0x180] sm:$0xff]
    %v359 = vld [vmem:[#allocation11 + $0x188] sm:$0xff]
    %v360 = vld [vmem:[#allocation11 + $0x190] sm:$0xff]
    %v361 = vld [vmem:[#allocation11 + $0x198] sm:$0xff]
    %v362 = vld [vmem:[#allocation11 + $0x1a0] sm:$0xff]
    %v363 = vld [vmem:[#allocation11 + $0x1a8] sm:$0xff]
    %v364 = vld [vmem:[#allocation11 + $0x1b0] sm:$0xff]
    %v365 = vld [vmem:[#allocation11 + $0x1b8] sm:$0xff]
    %v366 = vld [vmem:[#allocation11 + $0x1c0] sm:$0xff]
    %v367 = vld [vmem:[#allocation11 + $0x1c8] sm:$0xff]
    %v368 = vld [vmem:[#allocation11 + $0x1d0] sm:$0xff]
    %v369 = vld [vmem:[#allocation11 + $0x1d8] sm:$0xff]
    %v370 = vld [vmem:[#allocation11 + $0x1e0] sm:$0xff]
    %v371 = vld [vmem:[#allocation11 + $0x1e8] sm:$0xff]
    %v372 = vld [vmem:[#allocation11 + $0x1f0] sm:$0xff]
    %v373 = vld [vmem:[#allocation11 + $0x1f8] sm:$0xff]
    %v374 = vld [vmem:[%s7] sm:$0x3]
    %v375 = vld [vmem:[#allocation7] sm:$0xff]
    %vm376 = vcmp.gt.s32.totalorder %v375, 0
    %v377 = vlaneseq
    %v378 = vand.u32 %v377, 127
    %v379 = vld [vmem:[#allocation2] sm:$0xff]
    %v380 = vld [vmem:[#allocation2 + $0x8] sm:$0xff]
    %v381 = vld [vmem:[#allocation2 + $0x10] sm:$0xff]
    %v382 = vld [vmem:[#allocation2 + $0x18] sm:$0xff]
    %v383 = vld [vmem:[#allocation2 + $0x20] sm:$0xff]
    %v384 = vld [vmem:[#allocation2 + $0x28] sm:$0xff]
    %v385 = vld [vmem:[#allocation5] sm:$0xff]
    %v387 = vlaneseq
    %v388 = vshrl.u32 %v387, 7
    %v389 = vsub.s32 0, %v388
    %v390 = vrot.slane %v309, %v389
    %v391 = vlaneseq
    %v392 = vshrl.u32 %v391, 7
    %v393 = vsub.s32 1, %v392
    %v394 = vrot.slane %v309, %v393
    %v395 = vlaneseq
    %v396 = vshrl.u32 %v395, 7
    %v397 = vsub.s32 2, %v396
    %v398 = vrot.slane %v309, %v397
    %v399 = vlaneseq
    %v400 = vshrl.u32 %v399, 7
    %v401 = vsub.s32 3, %v400
    %v402 = vrot.slane %v309, %v401
    %v403 = vlaneseq
    %v404 = vshrl.u32 %v403, 7
    %v405 = vsub.s32 4, %v404
    %v406 = vrot.slane %v309, %v405
    %v407 = vlaneseq
    %v408 = vshrl.u32 %v407, 7
    %v409 = vsub.s32 5, %v408
    %v410 = vrot.slane %v309, %v409
    %417 = vmatprep.subr.mxu0 %v208
    %418 = vmatpush1.msra.mxu0 %v207
    %419 = vmatprep.subr.mxu0 %v202
    %420 = vmatpush1.msra.mxu0 %v201
    %421 = vmatprep.subr.mxu0 %v196
    %422 = vmatpush1.msra.mxu0 %v195
    %423 = vmatprep.subr.mxu0 %v190
    %424 = vmatpush1.msra.mxu0 %v189
    %425 = vmatprep.subr.mxu0 %v184
    %426 = vmatpush1.msra.mxu0 %v183
    %427 = vmatprep.subr.mxu0 %v178
    %428 = vmatpush1.msra.mxu0 %v177
    %429 = vmatprep.subr.mxu0 %v172
    %430 = vmatpush1.msra.mxu0 %v171
    %431 = vmatprep.subr.mxu0 %v166
    %432 = vmatpush1.msra.mxu0 %v165
    %433 = vmatprep.subr.mxu0 %v160
    %434 = vmatpush1.msra.mxu0 %v159
    %435 = vmatprep.subr.mxu0 %v154
    %436 = vmatpush1.msra.mxu0 %v153
    %437 = vmatprep.subr.mxu0 %v148
    %438 = vmatpush1.msra.mxu0 %v147
    %439 = vmatprep.subr.mxu0 %v142
    %440 = vmatpush1.msra.mxu0 %v141
    %441 = vmatprep.subr.mxu0 %v136
    %442 = vmatpush1.msra.mxu0 %v135
    %443 = vmatprep.subr.mxu0 %v130
    %444 = vmatpush1.msra.mxu0 %v129
    %445 = vmatprep.subr.mxu0 %v124
    %446 = vmatpush1.msra.mxu0 %v123
    %447 = vmatprep.subr.mxu0 %v118
    %448 = vmatpush1.msra.mxu0 %v117
    %449 = vmatprep.subr.mxu0 %v304
    %450 = vmatpush2.msra.mxu0 %v303
    %451 = vmatprep.subr.mxu0 %v298
    %452 = vmatpush2.msra.mxu0 %v297
    %453 = vmatprep.subr.mxu0 %v292
    %454 = vmatpush2.msra.mxu0 %v291
    %455 = vmatprep.subr.mxu0 %v286
    %456 = vmatpush2.msra.mxu0 %v285
    %457 = vmatprep.subr.mxu0 %v280
    %458 = vmatpush2.msra.mxu0 %v279
    %459 = vmatprep.subr.mxu0 %v274
    %460 = vmatpush2.msra.mxu0 %v273
    %461 = vmatprep.subr.mxu0 %v268
    %462 = vmatpush2.msra.mxu0 %v267
    %463 = vmatprep.subr.mxu0 %v262
    %464 = vmatpush2.msra.mxu0 %v261
    %465 = vmatprep.subr.mxu0 %v256
    %466 = vmatpush2.msra.mxu0 %v255
    %467 = vmatprep.subr.mxu0 %v250
    %468 = vmatpush2.msra.mxu0 %v249
    %469 = vmatprep.subr.mxu0 %v244
    %470 = vmatpush2.msra.mxu0 %v243
    %471 = vmatprep.subr.mxu0 %v238
    %472 = vmatpush2.msra.mxu0 %v237
    %473 = vmatprep.subr.mxu0 %v232
    %474 = vmatpush2.msra.mxu0 %v231
    %475 = vmatprep.subr.mxu0 %v226
    %476 = vmatpush2.msra.mxu0 %v225
    %477 = vmatprep.subr.mxu0 %v220
    %478 = vmatpush2.msra.mxu0 %v219
    %479 = vmatprep.subr.mxu0 %v214
    %480 = vmatpush2.msra.mxu0 %v213
    %481 = vmatprep.mubr.f32.mxu0 %v116
    %482 = vmatmul.mubr.f32.gmra.mxu0 %v115
    %v483 = vpop.f32.mrf.mxu0
    %v484 = vadd.f32 %v390, %v483
    %v485 = vpop.f32.mrf.mxu0
    %v486 = vadd.f32 %v394, %v485
    %487 = vdwg.mxu0
    %488 = vmatprep.subr.mxu0 %v210
    %489 = vmatpush1.msra.mxu0 %v209
    %490 = vmatprep.subr.mxu0 %v204
    %491 = vmatpush1.msra.mxu0 %v203
    %492 = vmatprep.subr.mxu0 %v198
    %493 = vmatpush1.msra.mxu0 %v197
    %494 = vmatprep.subr.mxu0 %v192
    %495 = vmatpush1.msra.mxu0 %v191
    %496 = vmatprep.subr.mxu0 %v186
    %497 = vmatpush1.msra.mxu0 %v185
    %498 = vmatprep.subr.mxu0 %v180
    %499 = vmatpush1.msra.mxu0 %v179
    %500 = vmatprep.subr.mxu0 %v174
    %501 = vmatpush1.msra.mxu0 %v173
    %502 = vmatprep.subr.mxu0 %v168
    %503 = vmatpush1.msra.mxu0 %v167
    %504 = vmatprep.subr.mxu0 %v162
    %505 = vmatpush1.msra.mxu0 %v161
    %506 = vmatprep.subr.mxu0 %v156
    %507 = vmatpush1.msra.mxu0 %v155
    %508 = vmatprep.subr.mxu0 %v150
    %509 = vmatpush1.msra.mxu0 %v149
    %510 = vmatprep.subr.mxu0 %v144
    %511 = vmatpush1.msra.mxu0 %v143
    %512 = vmatprep.subr.mxu0 %v138
    %513 = vmatpush1.msra.mxu0 %v137
    %514 = vmatprep.subr.mxu0 %v132
    %515 = vmatpush1.msra.mxu0 %v131
    %516 = vmatprep.subr.mxu0 %v126
    %517 = vmatpush1.msra.mxu0 %v125
    %518 = vmatprep.subr.mxu0 %v120
    %519 = vmatpush1.msra.mxu0 %v119
    %520 = vmatprep.subr.mxu0 %v306
    %521 = vmatpush2.msra.mxu0 %v305
    %522 = vmatprep.subr.mxu0 %v300
    %523 = vmatpush2.msra.mxu0 %v299
    %524 = vmatprep.subr.mxu0 %v294
    %525 = vmatpush2.msra.mxu0 %v293
    %526 = vmatprep.subr.mxu0 %v288
    %527 = vmatpush2.msra.mxu0 %v287
    %528 = vmatprep.subr.mxu0 %v282
    %529 = vmatpush2.msra.mxu0 %v281
    %530 = vmatprep.subr.mxu0 %v276
    %531 = vmatpush2.msra.mxu0 %v275
    %532 = vmatprep.subr.mxu0 %v270
    %533 = vmatpush2.msra.mxu0 %v269
    %534 = vmatprep.subr.mxu0 %v264
    %535 = vmatpush2.msra.mxu0 %v263
    %536 = vmatprep.subr.mxu0 %v258
    %537 = vmatpush2.msra.mxu0 %v257
    %538 = vmatprep.subr.mxu0 %v252
    %539 = vmatpush2.msra.mxu0 %v251
    %540 = vmatprep.subr.mxu0 %v246
    %541 = vmatpush2.msra.mxu0 %v245
    %542 = vmatprep.subr.mxu0 %v240
    %543 = vmatpush2.msra.mxu0 %v239
    %544 = vmatprep.subr.mxu0 %v234
    %545 = vmatpush2.msra.mxu0 %v233
    %546 = vmatprep.subr.mxu0 %v228
    %547 = vmatpush2.msra.mxu0 %v227
    %548 = vmatprep.subr.mxu0 %v222
    %549 = vmatpush2.msra.mxu0 %v221
    %550 = vmatprep.subr.mxu0 %v216
    %551 = vmatpush2.msra.mxu0 %v215
    %552 = vmatprep.mubr.f32.mxu0 %v116
    %553 = vmatmul.mubr.f32.gmra.mxu0 %v115
    %v554 = vpop.f32.mrf.mxu0
    %v555 = vadd.f32 %v398, %v554
    %v556 = vpop.f32.mrf.mxu0
    %v557 = vadd.f32 %v402, %v556
    %558 = vdwg.mxu0
    %559 = vmatprep.subr.mxu0 %v212
    %560 = vmatpush1.msra.mxu0 %v211
    %561 = vmatprep.subr.mxu0 %v206
    %562 = vmatpush1.msra.mxu0 %v205
    %563 = vmatprep.subr.mxu0 %v200
    %564 = vmatpush1.msra.mxu0 %v199
    %565 = vmatprep.subr.mxu0 %v194
    %566 = vmatpush1.msra.mxu0 %v193
    %567 = vmatprep.subr.mxu0 %v188
    %568 = vmatpush1.msra.mxu0 %v187
    %569 = vmatprep.subr.mxu0 %v182
    %570 = vmatpush1.msra.mxu0 %v181
    %571 = vmatprep.subr.mxu0 %v176
    %572 = vmatpush1.msra.mxu0 %v175
    %573 = vmatprep.subr.mxu0 %v170
    %574 = vmatpush1.msra.mxu0 %v169
    %575 = vmatprep.subr.mxu0 %v164
    %576 = vmatpush1.msra.mxu0 %v163
    %577 = vmatprep.subr.mxu0 %v158
    %578 = vmatpush1.msra.mxu0 %v157
    %579 = vmatprep.subr.mxu0 %v152
    %580 = vmatpush1.msra.mxu0 %v151
    %581 = vmatprep.subr.mxu0 %v146
    %582 = vmatpush1.msra.mxu0 %v145
    %583 = vmatprep.subr.mxu0 %v140
    %584 = vmatpush1.msra.mxu0 %v139
    %585 = vmatprep.subr.mxu0 %v134
    %586 = vmatpush1.msra.mxu0 %v133
    %587 = vmatprep.subr.mxu0 %v128
    %588 = vmatpush1.msra.mxu0 %v127
    %589 = vmatprep.subr.mxu0 %v122
    %590 = vmatpush1.msra.mxu0 %v121
    %591 = vmatprep.subr.mxu0 %v308
    %592 = vmatpush2.msra.mxu0 %v307
    %593 = vmatprep.subr.mxu0 %v302
    %594 = vmatpush2.msra.mxu0 %v301
    %595 = vmatprep.subr.mxu0 %v296
    %596 = vmatpush2.msra.mxu0 %v295
    %597 = vmatprep.subr.mxu0 %v290
    %598 = vmatpush2.msra.mxu0 %v289
    %599 = vmatprep.subr.mxu0 %v284
    %600 = vmatpush2.msra.mxu0 %v283
    %601 = vmatprep.subr.mxu0 %v278
    %602 = vmatpush2.msra.mxu0 %v277
    %603 = vmatprep.subr.mxu0 %v272
    %604 = vmatpush2.msra.mxu0 %v271
    %605 = vmatprep.subr.mxu0 %v266
    %606 = vmatpush2.msra.mxu0 %v265
    %607 = vmatprep.subr.mxu0 %v260
    %608 = vmatpush2.msra.mxu0 %v259
    %609 = vmatprep.subr.mxu0 %v254
    %610 = vmatpush2.msra.mxu0 %v253
    %611 = vmatprep.subr.mxu0 %v248
    %612 = vmatpush2.msra.mxu0 %v247
    %613 = vmatprep.subr.mxu0 %v242
    %614 = vmatpush2.msra.mxu0 %v241
    %615 = vmatprep.subr.mxu0 %v236
    %616 = vmatpush2.msra.mxu0 %v235
    %617 = vmatprep.subr.mxu0 %v230
    %618 = vmatpush2.msra.mxu0 %v229
    %619 = vmatprep.subr.mxu0 %v224
    %620 = vmatpush2.msra.mxu0 %v223
    %621 = vmatprep.subr.mxu0 %v218
    %622 = vmatpush2.msra.mxu0 %v217
    %623 = vmatprep.mubr.f32.mxu0 %v116
    %624 = vmatmul.mubr.f32.gmra.mxu0 %v115
    %v625 = vpop.f32.mrf.mxu0
    %v626 = vadd.f32 %v406, %v625
    %v627 = vpop.f32.mrf.mxu0
    %v628 = vadd.f32 %v410, %v627
    %629 = vdwg.mxu0
    %v630 = vadd.f32 %v379, %v484
    %v631 = vadd.f32 %v380, %v486
    %v632 = vadd.f32 %v381, %v555
    %v633 = vadd.f32 %v382, %v557
    %v634 = vxor.u32 %v630, 2147483648
    %v635 = vxor.u32 %v631, 2147483648
    %v636 = vxor.u32 %v632, 2147483648
    %v637 = vxor.u32 %v633, 2147483648
    %v638 = vmul.f32 %v634, 1.442695
    %v639 = vpow.pop %v638
    %v640 = vmul.f32 %v635, 1.442695
    %v641 = vpow.pop %v640
    %v642 = vmul.f32 %v636, 1.442695
    %v643 = vpow.pop %v642
    %v644 = vmul.f32 %v637, 1.442695
    %v645 = vpow.pop %v644
    %v646 = vadd.f32 %v639, 1.0
    %v647 = vadd.f32 %v641, 1.0
    %v648 = vadd.f32 %v643, 1.0
    %v649 = vadd.f32 %v645, 1.0
    %v650 = vrcp.pop %v646
    %v651 = vmul.f32 1.0, %v650
    %v652 = vrcp.pop %v647
    %v653 = vmul.f32 1.0, %v652
    %v654 = vrcp.pop %v648
    %v655 = vmul.f32 1.0, %v654
    %v656 = vrcp.pop %v649
    %v657 = vmul.f32 1.0, %v656
    %v658 = vmul.f32 %v651, %v626
    %v659 = vmul.f32 %v653, %v628
    %v660 = vadd.f32 %v383, %v658
    %v661 = vadd.f32 %v384, %v659
    %v662 = vtanh.pop %v660
    %v663 = vtanh.pop %v661
    %v664 = vsub.f32 1.0, %v655
    %v665 = vsub.f32 1.0, %v657
    %v666 = vmul.f32 %v664, %v662
    %v667 = vmul.f32 %v665, %v663
    %v668 = vmul.f32 %v655, %v115
    %v669 = vmul.f32 %v657, %v116
    %v670 = vadd.f32 %v666, %v668
    %v671 = vadd.f32 %v667, %v669
    %v673 = vlaneseq
    %v674 = vshrl.u32 %v673, 7
    %v675 = vsub.s32 0, %v674
    %v676 = vrot.slane %v374, %v675
    %v677 = vlaneseq
    %v678 = vshrl.u32 %v677, 7
    %v679 = vsub.s32 1, %v678
    %v680 = vrot.slane %v374, %v679
    %683 = vmatprep.subr.mxu0 %v341
    %684 = vmatpush1.msra.mxu0 %v340
    %685 = vmatprep.subr.mxu0 %v339
    %686 = vmatpush1.msra.mxu0 %v338
    %687 = vmatprep.subr.mxu0 %v337
    %688 = vmatpush1.msra.mxu0 %v336
    %689 = vmatprep.subr.mxu0 %v335
    %690 = vmatpush1.msra.mxu0 %v334
    %691 = vmatprep.subr.mxu0 %v333
    %692 = vmatpush1.msra.mxu0 %v332
    %693 = vmatprep.subr.mxu0 %v331
    %694 = vmatpush1.msra.mxu0 %v330
    %695 = vmatprep.subr.mxu0 %v329
    %696 = vmatpush1.msra.mxu0 %v328
    %697 = vmatprep.subr.mxu0 %v327
    %698 = vmatpush1.msra.mxu0 %v326
    %699 = vmatprep.subr.mxu0 %v325
    %700 = vmatpush1.msra.mxu0 %v324
    %701 = vmatprep.subr.mxu0 %v323
    %702 = vmatpush1.msra.mxu0 %v322
    %703 = vmatprep.subr.mxu0 %v321
    %704 = vmatpush1.msra.mxu0 %v320
    %705 = vmatprep.subr.mxu0 %v319
    %706 = vmatpush1.msra.mxu0 %v318
    %707 = vmatprep.subr.mxu0 %v317
    %708 = vmatpush1.msra.mxu0 %v316
    %709 = vmatprep.subr.mxu0 %v315
    %710 = vmatpush1.msra.mxu0 %v314
    %711 = vmatprep.subr.mxu0 %v313
    %712 = vmatpush1.msra.mxu0 %v312
    %713 = vmatprep.subr.mxu0 %v311
    %714 = vmatpush1.msra.mxu0 %v310
    %715 = vmatprep.subr.mxu0 %v373
    %716 = vmatpush2.msra.mxu0 %v372
    %717 = vmatprep.subr.mxu0 %v371
    %718 = vmatpush2.msra.mxu0 %v370
    %719 = vmatprep.subr.mxu0 %v369
    %720 = vmatpush2.msra.mxu0 %v368
    %721 = vmatprep.subr.mxu0 %v367
    %722 = vmatpush2.msra.mxu0 %v366
    %723 = vmatprep.subr.mxu0 %v365
    %724 = vmatpush2.msra.mxu0 %v364
    %725 = vmatprep.subr.mxu0 %v363
    %726 = vmatpush2.msra.mxu0 %v362
    %727 = vmatprep.subr.mxu0 %v361
    %728 = vmatpush2.msra.mxu0 %v360
    %729 = vmatprep.subr.mxu0 %v359
    %730 = vmatpush2.msra.mxu0 %v358
    %731 = vmatprep.subr.mxu0 %v357
    %732 = vmatpush2.msra.mxu0 %v356
    %733 = vmatprep.subr.mxu0 %v355
    %734 = vmatpush2.msra.mxu0 %v354
    %735 = vmatprep.subr.mxu0 %v353
    %736 = vmatpush2.msra.mxu0 %v352
    %737 = vmatprep.subr.mxu0 %v351
    %738 = vmatpush2.msra.mxu0 %v350
    %739 = vmatprep.subr.mxu0 %v349
    %740 = vmatpush2.msra.mxu0 %v348
    %741 = vmatprep.subr.mxu0 %v347
    %742 = vmatpush2.msra.mxu0 %v346
    %743 = vmatprep.subr.mxu0 %v345
    %744 = vmatpush2.msra.mxu0 %v344
    %745 = vmatprep.subr.mxu0 %v343
    %746 = vmatpush2.msra.mxu0 %v342
    %747 = vmatprep.mubr.f32.mxu0 %v671
    %748 = vmatmul.mubr.f32.gmra.mxu0 %v670
    %v749 = vpop.f32.mrf.mxu0
    %v750 = vadd.f32 %v676, %v749
    %v751 = vpop.f32.mrf.mxu0
    %v752 = vadd.f32 %v680, %v751
    %753 = vdwg.mxu0
    %v754 = vsel %vm376, %v750, -3.4028235e+38
    %755 = vmax.xlane.f32.xlu0 %v754
    %v756 = vpop.xlane.xlu0 %755
    %v757 = vsub.f32 %v754, %v756
    %v758 = vmul.f32 %v757, 1.442695
    %v759 = vpow.pop %v758
    %760 = vadd.xlane.f32.xlu0 %v759
    %v761 = vpop.xlane.xlu0 %760
    %v762 = vlog2.pop %v761
    %v763 = vmul.f32 %v762, 0.6931472
    %v764 = vadd.f32 %v756, %v763
    %v765 = vsub.f32 %v754, %v764
    %v766 = vrcp.pop %v761
    %v767 = vmul.f32 %v759, %v766
    %v768 = vadd.f32 %v765, %v385
    %v769 = vsel %vm376, %v768, -3.4028235e+38
    %770 = vmax.xlane.f32.xlu0 %v769
    %v771 = vpop.xlane.xlu0 %770
    %vm772 = vcmp.eq.f32.partialorder %v769, %v771
    %v773 = vsel %vm772, %v378, 128
    %v774 = vand.u32 %v773, 65535
    %v775 = vshra.s32 %v773, 16
    %v776 = vcvt.s32.f32 %v774
    %v777 = vcvt.s32.f32 %v775
    %778 = vmin.xlane.f32.xlu0 %v777
    %v779 = vpop.xlane.xlu0 %778
    %vm780 = vcmp.eq.f32.partialorder %v777, %v779
    %v781 = vsel %vm780, %v776, inf
    %782 = vmin.xlane.f32.xlu0 %v781
    %v783 = vpop.xlane.xlu0 %782
    %v784 = vcvt.f32.s32 %v783
    %v785 = vcvt.f32.s32 %v779
    %v786 = vshll.u32 %v785, 16
    %v787 = vadd.s32 %v786, %v784
    %vm788 = vcmp.eq.s32.totalorder %v378, %v787
    %v789 = vsel %vm788, %v765, 0.0
    %790 = vadd.xlane.f32.xlu0 %v789
    %v791 = vpop.xlane.xlu0 %790
    %v792 = vmul.f32 %v765, %v767
    %v793 = vsel %vm376, %v792, 0.0
    %794 = vadd.xlane.f32.xlu0 %v793
    %v795 = vpop.xlane.xlu0 %794
    %v796 = vsub.f32 0.0, %v795
    %vm797 = vcmp.eq.s32.totalorder %v378, 0
    %v798 = vcvt.s32.f32 %v787
    %v799 = vsel %vm797, %v798, 0.0
    %vm800 = vcmp.eq.s32.totalorder %v378, 1
    %v801 = vsel %vm800, %v791, 0.0
    %v802 = vadd.f32 %v799, %v801
    %vm803 = vcmp.eq.s32.totalorder %v378, 2
    %v804 = vsel %vm803, %v796, 0.0
    %v805 = vadd.f32 %v802, %v804
    %vm806 = vcmp.eq.s32.totalorder %v378, 3
    %808 = vset.pattern.permute.xlu0 0
    %809 = vperm.xlu0 %808, %v752
    %v810 = vpop.permute.xlu0 %809
    %v812 = vsel %vm806, %v810, 0.0
    %v813 = vadd.f32 %v805, %v812
    %814 = vst [vmem:[#allocation13] sm:$0xff] %v767
    %815 = vst [vmem:[#allocation13 + $0x8] sm:$0xff] %v813
    %816 = vst [vmem:[#allocation14] sm:$0xff] %v670
    %817 = vst [vmem:[#allocation14 + $0x8] sm:$0xff] %v671
    // Predicated region
    $region62: #{tpu_custom_call.1} parent=1 // pred_check
      _
    $region63: #{tpu_custom_call.1} parent=1 // pred_check_branch
      %819 = sbr.rel (0) target = $region65
    $region64: #{tpu_custom_call.1} parent=1 // pred_region
      %s821 = ssub.s32 256, 256
      %822 = vsyncadd [#allocation4], %s821
      %s824 = sshll.u32 [#allocation13], 4
      %s825 = int_to_ptr.vmem [resolvable:$true] %s824
      %827 = dma.vmem_to_hbm [thread:$0]  %s825, 256, %s8, [#allocation4]
    $region65: #{tpu_custom_call.1} parent=1 // pred_fallthru
      _
    // Predicated region
    $region66: #{tpu_custom_call.1} parent=1 // pred_check
      _
    $region67: #{tpu_custom_call.1} parent=1 // pred_check_branch
      %829 = sbr.rel (0) target = $region69
    $region68: #{tpu_custom_call.1} parent=1 // pred_region
      %s831 = ssub.s32 256, 256
      %832 = vsyncadd [#allocation15], %s831
      %s834 = sshll.u32 [#allocation14], 4
      %s835 = int_to_ptr.vmem [resolvable:$true] %s834
      %837 = dma.vmem_to_hbm [thread:$0]  %s835, 256, %s9, [#allocation15]
    $region69: #{tpu_custom_call.1} parent=1 // pred_fallthru
      _
    // Predicated region
    $region70: #{tpu_custom_call.1} parent=1 // pred_check
      _
    $region71: #{tpu_custom_call.1} parent=1 // pred_check_branch
      %839 = sbr.rel (0) target = $region73
    $region72: #{tpu_custom_call.1} parent=1 // pred_region
      %840 = dma.done [#allocation4], 256
    $region73: #{tpu_custom_call.1} parent=1 // pred_fallthru
      _
    // Predicated region
    $region74: #{tpu_custom_call.1} parent=1 // pred_check
      _
    $region75: #{tpu_custom_call.1} parent=1 // pred_check_branch
      %842 = sbr.rel (0) target = $region77
    $region76: #{tpu_custom_call.1} parent=1 // pred_region
      %843 = dma.done [#allocation15], 256
    $region77: #{tpu_custom_call.1} parent=1 // pred_fallthru
      _
    %844 = vsyncpa [#allocation3], 1
    %845 = vsyncpa [#allocation6], 1
    %846 = vsyncpa [#allocation9], 1
    %847 = vsyncpa [#allocation12], 1
    %848 = vsyncpa [#allocation4], 1
    %849 = vsyncpa [#allocation15], 1

</llo_original>
